<compile_context>
chip_gen: v7x
topology: tpu7x:2x2x1
jax: 0.10.0
libtpu: 0.0.40
codegen_flags: <defaults>
</compile_context>

<pallas_src>
import math

import jax
import jax.numpy as jnp
from jax.experimental import pallas as pl
from jax.experimental.pallas import tpu as pltpu


def _round_up(a, b):
    return (a + b - 1) // b * b


def _gcn_kernel_tailw(adj_ref, feat_ref, w_ref, o_ref, acc_ref):
    """Accumulate adj_tile @ feat_tile; apply the small W matmul at k==last."""
    k = pl.program_id(1)

    @pl.when(k == 0)
    def _init():
        acc_ref[...] = jnp.zeros_like(acc_ref)

    acc_ref[...] += jnp.dot(adj_ref[...], feat_ref[...],
                            preferred_element_type=jnp.float32)

    @pl.when(k == pl.num_programs(1) - 1)
    def _finish():
        o_ref[...] = jnp.dot(acc_ref[...], w_ref[...],
                             preferred_element_type=jnp.float32
                             ).astype(o_ref.dtype)


def _gcn_kernel_plain(adj_ref, feat_ref, o_ref, acc_ref):
    """Accumulate adj_tile @ feat_tile; feat already carries the weight."""
    k = pl.program_id(1)

    @pl.when(k == 0)
    def _init():
        acc_ref[...] = jnp.zeros_like(acc_ref)

    acc_ref[...] += jnp.dot(adj_ref[...], feat_ref[...],
                            preferred_element_type=jnp.float32)

    @pl.when(k == pl.num_programs(1) - 1)
    def _finish():
        o_ref[...] = acc_ref[...].astype(o_ref.dtype)


def graph_convolution(adj, x, weight, *, compute_dtype=None):
    """adj: (N, N), x: (N, D_in), weight: (D_in, D_out) -> (N, D_out).

    compute_dtype: optionally cast adj / features to e.g. jnp.bfloat16 for the
    MXU (v6e/v7x); accumulation stays float32.  Default keeps input dtype.
    """
    n, d_in = x.shape
    d_out = weight.shape[1]
    assert adj.shape == (n, n)
    assert weight.shape == (d_in, d_out)
    out_dtype = x.dtype

    # --- pick matmul association by the smaller feature width -------------
    if d_in <= d_out:
        feat = x              # kernel computes (adj @ x) @ W, W applied at k==last
        tail_w = weight
        f = d_in
    else:
        # Small matmul hoisted out of the per-tile path (plain XLA).
        feat = jnp.dot(x, weight,
                       preferred_element_type=jnp.float32).astype(x.dtype)
        tail_w = None
        f = d_out

    # --- padded / tiled layout (lane-dense, (8,128)-friendly) --------------
    n_pad = _round_up(n, 128)
    tm = 256 if n_pad % 256 == 0 else 128                    # adj row tile
    tk = next(t for t in (512, 256, 128) if n_pad % t == 0)  # contraction tile
    f_pad = _round_up(f, 128)
    d_out_pad = _round_up(d_out, 128)

    adj_p = jnp.pad(adj, ((0, n_pad - n), (0, n_pad - n)))
    feat_p = jnp.pad(feat, ((0, n_pad - n), (0, f_pad - f)))
    if compute_dtype is not None:
        adj_p = adj_p.astype(compute_dtype)
        feat_p = feat_p.astype(compute_dtype)

    grid = (n_pad // tm, n_pad // tk)

    in_specs = [
        pl.BlockSpec((tm, tk), lambda i, k: (i, k)),      # adj row/col tile
        pl.BlockSpec((tk, f_pad), lambda i, k: (k, 0)),   # feature tile (contraction)
    ]
    args = [adj_p, feat_p]

    if tail_w is not None:
        w_p = jnp.pad(tail_w.astype(jnp.float32),
                      ((0, f_pad - d_in), (0, d_out_pad - d_out)))
        in_specs.append(pl.BlockSpec((f_pad, d_out_pad), lambda i, k: (0, 0)))
        args.append(w_p)
        kernel = _gcn_kernel_tailw
    else:
        kernel = _gcn_kernel_plain

    out_p = pl.pallas_call(
        kernel,
        out_shape=jax.ShapeDtypeStruct((n_pad, d_out_pad), out_dtype),
        grid_spec=pltpu.PrefetchScalarGridSpec(
            num_scalar_prefetch=0,
            grid=grid,
            in_specs=in_specs,
            out_specs=pl.BlockSpec((tm, d_out_pad), lambda i, k: (i, 0)),
            scratch_shapes=[pltpu.VMEM((tm, f_pad), jnp.float32)],
        ),
        compiler_params=pltpu.CompilerParams(
            dimension_semantics=("parallel", "arbitrary"),
            vmem_limit_bytes=32 * 1024 * 1024,
        ),
    )(*args)

    return out_p[:n, :d_out]


def init_weight(key, input_dim, output_dim):
    # matches torch.nn.init.uniform_(w, -r, r), r = sqrt(6 / (in + out))
    init_range = math.sqrt(6.0 / (input_dim + output_dim))
    return jax.random.uniform(
        key, (input_dim, output_dim), dtype=jnp.float32,
        minval=-init_range, maxval=init_range)


if __name__ == "__main__":
    key = jax.random.PRNGKey(0)
    k_adj, k_x, k_w, k_adj2, k_x2, k_w2 = jax.random.split(key, 6)

    # --- test 1: module-like shapes, D_in < D_out (tail-W kernel path) -----
    N, D_IN, D_OUT = 16, 8, 32
    a = jax.random.uniform(k_adj, (N, N), dtype=jnp.float32)
    adj = (a + a.T) * 0.5
    x = jax.random.normal(k_x, (N, D_IN), dtype=jnp.float32)
    w = init_weight(k_w, D_IN, D_OUT)

    out = jax.block_until_ready(graph_convolution(adj, x, w))
    ref = adj @ (x @ w)
    assert out.shape == (N, D_OUT)
    assert jnp.allclose(out, ref, atol=1e-4, rtol=1e-4)

    # --- test 2: multi-tile grid + D_in > D_out (hoisted-XW kernel path) ----
    N2, D_IN2, D_OUT2 = 384, 64, 48
    a2 = jax.random.uniform(k_adj2, (N2, N2), dtype=jnp.float32)
    adj2 = (a2 + a2.T) * 0.5
    x2 = jax.random.normal(k_x2, (N2, D_IN2), dtype=jnp.float32)
    w2 = init_weight(k_w2, D_IN2, D_OUT2)

    out2 = jax.block_until_ready(graph_convolution(adj2, x2, w2))
    ref2 = adj2 @ (x2 @ w2)
    assert out2.shape == (N2, D_OUT2)
    assert jnp.allclose(out2, ref2, atol=1e-3, rtol=1e-3)

    print("KERNEL_OK")
</pallas_src>

<mosaic_0001>
module attributes {stable_mosaic.version = 11 : i64} {
  func.func @_gcn_kernel_tailw(%arg0: i32, %arg1: i32, %arg2: memref<128x128xf32, #tpu.memory_space<vmem>>, %arg3: memref<128x128xf32, #tpu.memory_space<vmem>>, %arg4: memref<128x128xf32, #tpu.memory_space<vmem>>, %arg5: memref<128x128xf32, #tpu.memory_space<vmem>>, %arg6: memref<128x128xf32, #tpu.memory_space<vmem>>) attributes {dimension_semantics = [#tpu.dimension_semantics<parallel>, #tpu.dimension_semantics<arbitrary>], iteration_bounds = array<i64: 1, 1>, scalar_prefetch = 0 : i64, scratch_operands = 1 : i64, tpu.core_type = #tpu.core_type<tc>, window_params = [{transform_indices = @transform_0, window_bounds = array<i64: 128, 128>}, {transform_indices = @transform_1, window_bounds = array<i64: 128, 128>}, {pipeline_mode = #tpu.pipeline_mode<synchronous>, transform_indices = @transform_2, window_bounds = array<i64: 128, 128>}, {transform_indices = @transform_3, window_bounds = array<i64: 128, 128>}]} {
    %c0_i32 = arith.constant 0 : i32
    %0 = arith.cmpi eq, %arg1, %c0_i32 : i32
    %1 = arith.extui %0 : i1 to i32
    %c0_i32_0 = arith.constant 0 : i32
    %2 = arith.cmpi ne, %1, %c0_i32_0 : i32
    scf.if %2 {
      %cst_10 = arith.constant 0.000000e+00 : f32
      %12 = vector.broadcast %cst_10 : f32 to vector<128x128xf32>
      %c0_11 = arith.constant 0 : index
      %c0_12 = arith.constant 0 : index
      %13 = vector.load %arg6[%c0_11, %c0_12] : memref<128x128xf32, #tpu.memory_space<vmem>>, vector<128x128xf32>
      tpu.vector_store %arg6[%c0_11, %c0_12], %12 {strides = array<i32>} : memref<128x128xf32, #tpu.memory_space<vmem>>, vector<128x128xf32>,
    } else {
    }
    %c0 = arith.constant 0 : index
    %c0_1 = arith.constant 0 : index
    %3 = vector.load %arg6[%c0, %c0_1] : memref<128x128xf32, #tpu.memory_space<vmem>>, vector<128x128xf32>
    %c0_2 = arith.constant 0 : index
    %c0_3 = arith.constant 0 : index
    %4 = vector.load %arg2[%c0_2, %c0_3] : memref<128x128xf32, #tpu.memory_space<vmem>>, vector<128x128xf32>
    %c0_4 = arith.constant 0 : index
    %c0_5 = arith.constant 0 : index
    %5 = vector.load %arg3[%c0_4, %c0_5] : memref<128x128xf32, #tpu.memory_space<vmem>>, vector<128x128xf32>
    %cst = arith.constant dense<0.000000e+00> : vector<128x128xf32>
    %6 = tpu.matmul %4, %5, %cst {dimension_numbers = #tpu.dot_dimension_numbers<[1], [0], [0], [1], [0, 0, 1, 1], [], []>} : vector<128x128xf32>, vector<128x128xf32>, vector<128x128xf32> -> vector<128x128xf32>
    %7 = arith.addf %3, %6 : vector<128x128xf32>
    %c0_6 = arith.constant 0 : index
    %c0_7 = arith.constant 0 : index
    %8 = vector.load %arg6[%c0_6, %c0_7] : memref<128x128xf32, #tpu.memory_space<vmem>>, vector<128x128xf32>
    tpu.vector_store %arg6[%c0_6, %c0_7], %7 {strides = array<i32>} : memref<128x128xf32, #tpu.memory_space<vmem>>, vector<128x128xf32>,
    %c0_i32_8 = arith.constant 0 : i32
    %9 = arith.cmpi eq, %arg1, %c0_i32_8 : i32
    %10 = arith.extui %9 : i1 to i32
    %c0_i32_9 = arith.constant 0 : i32
    %11 = arith.cmpi ne, %10, %c0_i32_9 : i32
    scf.if %11 {
      %c0_10 = arith.constant 0 : index
      %c0_11 = arith.constant 0 : index
      %12 = vector.load %arg6[%c0_10, %c0_11] : memref<128x128xf32, #tpu.memory_space<vmem>>, vector<128x128xf32>
      %c0_12 = arith.constant 0 : index
      %c0_13 = arith.constant 0 : index
      %13 = vector.load %arg4[%c0_12, %c0_13] : memref<128x128xf32, #tpu.memory_space<vmem>>, vector<128x128xf32>
      %cst_14 = arith.constant dense<0.000000e+00> : vector<128x128xf32>
      %14 = tpu.matmul %12, %13, %cst_14 {dimension_numbers = #tpu.dot_dimension_numbers<[1], [0], [0], [1], [0, 0, 1, 1], [], []>} : vector<128x128xf32>, vector<128x128xf32>, vector<128x128xf32> -> vector<128x128xf32>
      %c0_15 = arith.constant 0 : index
      %c0_16 = arith.constant 0 : index
      %15 = vector.load %arg5[%c0_15, %c0_16] : memref<128x128xf32, #tpu.memory_space<vmem>>, vector<128x128xf32>
      tpu.vector_store %arg5[%c0_15, %c0_16], %14 {strides = array<i32>} : memref<128x128xf32, #tpu.memory_space<vmem>>, vector<128x128xf32>,
    } else {
    }
    return
  }
  func.func @transform_0(%arg0: i32, %arg1: i32) -> (i32, i32) {
    %c0_i32 = arith.constant 0 : i32
    return %arg0, %arg1 : i32, i32
  }
  func.func @transform_1(%arg0: i32, %arg1: i32) -> (i32, i32) {
    %c0_i32 = arith.constant 0 : i32
    %c0_i32_0 = arith.constant 0 : i32
    return %arg1, %c0_i32 : i32, i32
  }
  func.func @transform_2(%arg0: i32, %arg1: i32) -> (i32, i32) {
    %c0_i32 = arith.constant 0 : i32
    %c0_i32_0 = arith.constant 0 : i32
    %c0_i32_1 = arith.constant 0 : i32
    return %c0_i32, %c0_i32_0 : i32, i32
  }
  func.func @transform_3(%arg0: i32, %arg1: i32) -> (i32, i32) {
    %c0_i32 = arith.constant 0 : i32
    %c0_i32_0 = arith.constant 0 : i32
    return %arg0, %c0_i32 : i32, i32
  }
}

</mosaic_0001>

<llo_original>
// kernel: tpu_custom_call.1
$region0: #{tpu_custom_call.1}
  #allocation0 [shape = 'u32[]', space=smem, size = 0x4, offset = 0x4, fixed_abs, tag = 'smem constant byte address 0x4 - core index']
  #allocation1 [shape = 'u32[144,128]{1,0:T(1,128)}', space=vmem, size = 0x12000, scoped, tag = 'internal scratch']
  #allocation2 [shape = 'f32[128,128]{1,0:T(8,128)}', space=vmem, size = 0x10000, scoped, tag = 'scratch operand']
  %s0 = inlined_call_operand.hbm [shape: f32[128,128], index: 0, kind: input, shape index: {}]
  %s1 = inlined_call_operand.hbm [shape: f32[128,128], index: 1, kind: input, shape index: {}]
  %s2 = inlined_call_operand.hbm [shape: f32[128,128], index: 2, kind: input, shape index: {}]
  %s3 = inlined_call_operand.hbm [shape: f32[128,128], index: 3, kind: output, shape index: {}]
  %s4 = sld [smem:[#allocation0]]
  $region42: #{tpu_custom_call.1} parent=0
    _
  %s6 = ssub.s32 1, %s4
  %s7 = scalar_select 0, %s6, %s4
  $region1: #{tpu_custom_call.1} parent=0
    #allocation3 [shape = 'u8[65536]{0}', space=vmem, size = 0x10000, scoped, tag = 'input window, operand 0, single buffered']
    #allocation4 [shape = 's32[1]{0}', space=sflag, size = 0x4, scoped, tag = 'scoped memory for tpu_custom_call.1']
    #allocation5 [shape = 's32[1]{0}', space=sflag, size = 0x4, scoped, tag = 'scoped memory for tpu_custom_call.1']
    #allocation6 [shape = 'u8[65536]{0}', space=vmem, size = 0x10000, scoped, tag = 'input window, operand 1, single buffered']
    #allocation7 [shape = 's32[1]{0}', space=sflag, size = 0x4, scoped, tag = 'scoped memory for tpu_custom_call.1']
    #allocation8 [shape = 'u8[65536]{0}', space=vmem, size = 0x10000, scoped, tag = 'input window, operand 2, single buffered']
    #allocation9 [shape = 'u8[65536]{0}', space=vmem, size = 0x10000, scoped, tag = 'output window, operand 0, single buffered']
    %8 = vsyncpa [#allocation4], 0
    %9 = vsyncpa [#allocation7], 0
    %10 = vsyncpa [#allocation5], 0
    // Predicated region
    $region2: #{tpu_custom_call.1} parent=1 // pred_check
      _
    $region3: #{tpu_custom_call.1} parent=1 // pred_check_branch
      %12 = sbr.rel (0) target = $region5
    $region4: #{tpu_custom_call.1} parent=1 // pred_region
      %s14 = ssub.s32 2048, 2048
      %15 = vsyncadd [#allocation4], %s14
      %s16 = sshll.u32 [#allocation3], 4
      %s17 = int_to_ptr.vmem [resolvable:$true] %s16
      %22 = dma.hbm_to_vmem [thread:$0]  %s0, 2048, %s17, [#allocation4], 128, 128, 8
    $region5: #{tpu_custom_call.1} parent=1 // pred_fallthru
      _
    // Predicated region
    $region6: #{tpu_custom_call.1} parent=1 // pred_check
      _
    $region7: #{tpu_custom_call.1} parent=1 // pred_check_branch
      %24 = sbr.rel (0) target = $region9
    $region8: #{tpu_custom_call.1} parent=1 // pred_region
      %s26 = ssub.s32 2048, 2048
      %27 = vsyncadd [#allocation7], %s26
      %s28 = sshll.u32 [#allocation6], 4
      %s29 = int_to_ptr.vmem [resolvable:$true] %s28
      %34 = dma.hbm_to_vmem [thread:$0]  %s1, 2048, %s29, [#allocation7], 128, 128, 8
    $region9: #{tpu_custom_call.1} parent=1 // pred_fallthru
      _
    // Predicated region
    $region10: #{tpu_custom_call.1} parent=1 // pred_check
      _
    $region11: #{tpu_custom_call.1} parent=1 // pred_check_branch
      %36 = sbr.rel (0) target = $region13
    $region12: #{tpu_custom_call.1} parent=1 // pred_region
      %s38 = ssub.s32 2048, 2048
      %39 = vsyncadd [#allocation7], %s38
      %s40 = sshll.u32 [#allocation8], 4
      %s41 = int_to_ptr.vmem [resolvable:$true] %s40
      %46 = dma.hbm_to_vmem [thread:$0]  %s2, 2048, %s41, [#allocation7], 128, 128, 8
    $region13: #{tpu_custom_call.1} parent=1 // pred_fallthru
      _
    // Predicated region
    $region14: #{tpu_custom_call.1} parent=1 // pred_check
      _
    $region15: #{tpu_custom_call.1} parent=1 // pred_check_branch
      %48 = sbr.rel (0) target = $region17
    $region16: #{tpu_custom_call.1} parent=1 // pred_region
      %49 = dma.done [#allocation4], 2048
    $region17: #{tpu_custom_call.1} parent=1 // pred_fallthru
      _
    // Predicated region
    $region18: #{tpu_custom_call.1} parent=1 // pred_check
      _
    $region19: #{tpu_custom_call.1} parent=1 // pred_check_branch
      %51 = sbr.rel (0) target = $region21
    $region20: #{tpu_custom_call.1} parent=1 // pred_region
      %52 = dma.done [#allocation7], 2048
    $region21: #{tpu_custom_call.1} parent=1 // pred_fallthru
      _
    // Predicated region
    $region22: #{tpu_custom_call.1} parent=1 // pred_check
      _
    $region23: #{tpu_custom_call.1} parent=1 // pred_check_branch
      %54 = sbr.rel (0) target = $region25
    $region24: #{tpu_custom_call.1} parent=1 // pred_region
      %55 = dma.done [#allocation7], 2048
    $region25: #{tpu_custom_call.1} parent=1 // pred_fallthru
      _
    %p56 = scmp.eq.s32.totalorder 0, 0
    // Predicated region
    $region26: #{tpu_custom_call.1} parent=1 // pred_check
      %p57 = pneg %p56
    $region27: #{tpu_custom_call.1} parent=1 // pred_check_branch
      %59 = sbr.rel (%p57) target = $region29
    $region28: #{tpu_custom_call.1} parent=1 // pred_region
      %60 = vst [vmem:[#allocation2] sm:$0xff] 0.0
      %61 = vst [vmem:[#allocation2 + $0x8] sm:$0xff] 0.0
      %62 = vst [vmem:[#allocation2 + $0x10] sm:$0xff] 0.0
      %63 = vst [vmem:[#allocation2 + $0x18] sm:$0xff] 0.0
      %64 = vst [vmem:[#allocation2 + $0x20] sm:$0xff] 0.0
      %65 = vst [vmem:[#allocation2 + $0x28] sm:$0xff] 0.0
      %66 = vst [vmem:[#allocation2 + $0x30] sm:$0xff] 0.0
      %67 = vst [vmem:[#allocation2 + $0x38] sm:$0xff] 0.0
      %68 = vst [vmem:[#allocation2 + $0x40] sm:$0xff] 0.0
      %69 = vst [vmem:[#allocation2 + $0x48] sm:$0xff] 0.0
      %70 = vst [vmem:[#allocation2 + $0x50] sm:$0xff] 0.0
      %71 = vst [vmem:[#allocation2 + $0x58] sm:$0xff] 0.0
      %72 = vst [vmem:[#allocation2 + $0x60] sm:$0xff] 0.0
      %73 = vst [vmem:[#allocation2 + $0x68] sm:$0xff] 0.0
      %74 = vst [vmem:[#allocation2 + $0x70] sm:$0xff] 0.0
      %75 = vst [vmem:[#allocation2 + $0x78] sm:$0xff] 0.0
    $region29: #{tpu_custom_call.1} parent=1 // pred_fallthru
      _
    %v76 = vld [vmem:[#allocation2] sm:$0xff]
    %v77 = vld [vmem:[#allocation2 + $0x8] sm:$0xff]
    %v78 = vld [vmem:[#allocation2 + $0x10] sm:$0xff]
    %v79 = vld [vmem:[#allocation2 + $0x18] sm:$0xff]
    %v80 = vld [vmem:[#allocation2 + $0x20] sm:$0xff]
    %v81 = vld [vmem:[#allocation2 + $0x28] sm:$0xff]
    %v82 = vld [vmem:[#allocation2 + $0x30] sm:$0xff]
    %v83 = vld [vmem:[#allocation2 + $0x38] sm:$0xff]
    %v84 = vld [vmem:[#allocation2 + $0x40] sm:$0xff]
    %v85 = vld [vmem:[#allocation2 + $0x48] sm:$0xff]
    %v86 = vld [vmem:[#allocation2 + $0x50] sm:$0xff]
    %v87 = vld [vmem:[#allocation2 + $0x58] sm:$0xff]
    %v88 = vld [vmem:[#allocation2 + $0x60] sm:$0xff]
    %v89 = vld [vmem:[#allocation2 + $0x68] sm:$0xff]
    %v90 = vld [vmem:[#allocation2 + $0x70] sm:$0xff]
    %v91 = vld [vmem:[#allocation2 + $0x78] sm:$0xff]
    %v92 = vld [vmem:[#allocation3] sm:$0xff]
    %v93 = vld [vmem:[#allocation3 + $0x8] sm:$0xff]
    %v94 = vld [vmem:[#allocation3 + $0x10] sm:$0xff]
    %v95 = vld [vmem:[#allocation3 + $0x18] sm:$0xff]
    %v96 = vld [vmem:[#allocation3 + $0x20] sm:$0xff]
    %v97 = vld [vmem:[#allocation3 + $0x28] sm:$0xff]
    %v98 = vld [vmem:[#allocation3 + $0x30] sm:$0xff]
    %v99 = vld [vmem:[#allocation3 + $0x38] sm:$0xff]
    %v100 = vld [vmem:[#allocation3 + $0x40] sm:$0xff]
    %v101 = vld [vmem:[#allocation3 + $0x48] sm:$0xff]
    %v102 = vld [vmem:[#allocation3 + $0x50] sm:$0xff]
    %v103 = vld [vmem:[#allocation3 + $0x58] sm:$0xff]
    %v104 = vld [vmem:[#allocation3 + $0x60] sm:$0xff]
    %v105 = vld [vmem:[#allocation3 + $0x68] sm:$0xff]
    %v106 = vld [vmem:[#allocation3 + $0x70] sm:$0xff]
    %v107 = vld [vmem:[#allocation3 + $0x78] sm:$0xff]
    %v108 = vld [vmem:[#allocation6] sm:$0xff]
    %v109 = vld [vmem:[#allocation6 + $0x8] sm:$0xff]
    %v110 = vld [vmem:[#allocation6 + $0x10] sm:$0xff]
    %v111 = vld [vmem:[#allocation6 + $0x18] sm:$0xff]
    %v112 = vld [vmem:[#allocation6 + $0x20] sm:$0xff]
    %v113 = vld [vmem:[#allocation6 + $0x28] sm:$0xff]
    %v114 = vld [vmem:[#allocation6 + $0x30] sm:$0xff]
    %v115 = vld [vmem:[#allocation6 + $0x38] sm:$0xff]
    %v116 = vld [vmem:[#allocation6 + $0x40] sm:$0xff]
    %v117 = vld [vmem:[#allocation6 + $0x48] sm:$0xff]
    %v118 = vld [vmem:[#allocation6 + $0x50] sm:$0xff]
    %v119 = vld [vmem:[#allocation6 + $0x58] sm:$0xff]
    %v120 = vld [vmem:[#allocation6 + $0x60] sm:$0xff]
    %v121 = vld [vmem:[#allocation6 + $0x68] sm:$0xff]
    %v122 = vld [vmem:[#allocation6 + $0x70] sm:$0xff]
    %v123 = vld [vmem:[#allocation6 + $0x78] sm:$0xff]
    %124 = vmatprep.subr.mxu0 0.0
    %125 = vmatpush1.msra.mxu0 %v108
    %126 = vmatprep.subr.mxu0 0.0
    %127 = vmatpush1.msra.mxu0 %v109
    %128 = vmatprep.subr.mxu0 0.0
    %129 = vmatpush1.msra.mxu0 %v110
    %130 = vmatprep.subr.mxu0 0.0
    %131 = vmatpush1.msra.mxu0 %v111
    %132 = vmatprep.subr.mxu0 0.0
    %133 = vmatpush1.msra.mxu0 %v112
    %134 = vmatprep.subr.mxu0 0.0
    %135 = vmatpush1.msra.mxu0 %v113
    %136 = vmatprep.subr.mxu0 0.0
    %137 = vmatpush1.msra.mxu0 %v114
    %138 = vmatprep.subr.mxu0 0.0
    %139 = vmatpush1.msra.mxu0 %v115
    %140 = vmatprep.subr.mxu0 0.0
    %141 = vmatpush1.msra.mxu0 %v116
    %142 = vmatprep.subr.mxu0 0.0
    %143 = vmatpush1.msra.mxu0 %v117
    %144 = vmatprep.subr.mxu0 0.0
    %145 = vmatpush1.msra.mxu0 %v118
    %146 = vmatprep.subr.mxu0 0.0
    %147 = vmatpush1.msra.mxu0 %v119
    %148 = vmatprep.subr.mxu0 0.0
    %149 = vmatpush1.msra.mxu0 %v120
    %150 = vmatprep.subr.mxu0 0.0
    %151 = vmatpush1.msra.mxu0 %v121
    %152 = vmatprep.subr.mxu0 0.0
    %153 = vmatpush1.msra.mxu0 %v122
    %154 = vmatprep.subr.mxu0 0.0
    %155 = vmatpush1.msra.mxu0 %v123
    %156 = vmatprep.subr.mxu0 0.0
    %157 = vmatpush1.msra.mxu0 0.0
    %158 = vmatprep.subr.mxu0 0.0
    %159 = vmatpush1.msra.mxu0 0.0
    %160 = vmatprep.subr.mxu0 0.0
    %161 = vmatpush1.msra.mxu0 0.0
    %162 = vmatprep.subr.mxu0 0.0
    %163 = vmatpush1.msra.mxu0 0.0
    %164 = vmatprep.subr.mxu0 0.0
    %165 = vmatpush1.msra.mxu0 0.0
    %166 = vmatprep.subr.mxu0 0.0
    %167 = vmatpush1.msra.mxu0 0.0
    %168 = vmatprep.subr.mxu0 0.0
    %169 = vmatpush1.msra.mxu0 0.0
    %170 = vmatprep.subr.mxu0 0.0
    %171 = vmatpush1.msra.mxu0 0.0
    %172 = vmatprep.subr.mxu0 0.0
    %173 = vmatpush1.msra.mxu0 0.0
    %174 = vmatprep.subr.mxu0 0.0
    %175 = vmatpush1.msra.mxu0 0.0
    %176 = vmatprep.subr.mxu0 0.0
    %177 = vmatpush1.msra.mxu0 0.0
    %178 = vmatprep.subr.mxu0 0.0
    %179 = vmatpush1.msra.mxu0 0.0
    %180 = vmatprep.subr.mxu0 0.0
    %181 = vmatpush1.msra.mxu0 0.0
    %182 = vmatprep.subr.mxu0 0.0
    %183 = vmatpush1.msra.mxu0 0.0
    %184 = vmatprep.subr.mxu0 0.0
    %185 = vmatpush1.msra.mxu0 0.0
    %186 = vmatprep.subr.mxu0 0.0
    %187 = vmatpush1.msra.mxu0 0.0
    %188 = vmatprep.mubr.f32.mxu0 0.0
    %189 = vmatmul.mubr.f32.gmra.mrb[0].mxu0 %v92
    %v190 = vpop.f32.mrb[0].mxu0
    %v191 = vadd.f32 0.0, %v190
    %v192 = vpop.f32.mrb[0].mxu0
    %193 = vmatprep.mubr.f32.mxu0 0.0
    %194 = vmatmul.mubr.f32.gmra.mrb[0].mxu0 %v93
    %v195 = vpop.f32.mrb[0].mxu0
    %v196 = vadd.f32 0.0, %v195
    %v197 = vpop.f32.mrb[0].mxu0
    %198 = vmatprep.mubr.f32.mxu0 0.0
    %199 = vmatmul.mubr.f32.gmra.mrb[0].mxu0 %v94
    %v200 = vpop.f32.mrb[0].mxu0
    %v201 = vadd.f32 0.0, %v200
    %v202 = vpop.f32.mrb[0].mxu0
    %203 = vmatprep.mubr.f32.mxu0 0.0
    %204 = vmatmul.mubr.f32.gmra.mrb[0].mxu0 %v95
    %v205 = vpop.f32.mrb[0].mxu0
    %v206 = vadd.f32 0.0, %v205
    %v207 = vpop.f32.mrb[0].mxu0
    %208 = vmatprep.mubr.f32.mxu0 0.0
    %209 = vmatmul.mubr.f32.gmra.mrb[0].mxu0 %v96
    %v210 = vpop.f32.mrb[0].mxu0
    %v211 = vadd.f32 0.0, %v210
    %v212 = vpop.f32.mrb[0].mxu0
    %213 = vmatprep.mubr.f32.mxu0 0.0
    %214 = vmatmul.mubr.f32.gmra.mrb[0].mxu0 %v97
    %v215 = vpop.f32.mrb[0].mxu0
    %v216 = vadd.f32 0.0, %v215
    %v217 = vpop.f32.mrb[0].mxu0
    %218 = vmatprep.mubr.f32.mxu0 0.0
    %219 = vmatmul.mubr.f32.gmra.mrb[0].mxu0 %v98
    %v220 = vpop.f32.mrb[0].mxu0
    %v221 = vadd.f32 0.0, %v220
    %v222 = vpop.f32.mrb[0].mxu0
    %223 = vmatprep.mubr.f32.mxu0 0.0
    %224 = vmatmul.mubr.f32.gmra.mrb[0].mxu0 %v99
    %v225 = vpop.f32.mrb[0].mxu0
    %v226 = vadd.f32 0.0, %v225
    %v227 = vpop.f32.mrb[0].mxu0
    %228 = vmatprep.mubr.f32.mxu0 0.0
    %229 = vmatmul.mubr.f32.gmra.mrb[0].mxu0 %v100
    %v230 = vpop.f32.mrb[0].mxu0
    %v231 = vadd.f32 0.0, %v230
    %v232 = vpop.f32.mrb[0].mxu0
    %233 = vmatprep.mubr.f32.mxu0 0.0
    %234 = vmatmul.mubr.f32.gmra.mrb[0].mxu0 %v101
    %v235 = vpop.f32.mrb[0].mxu0
    %v236 = vadd.f32 0.0, %v235
    %v237 = vpop.f32.mrb[0].mxu0
    %238 = vmatprep.mubr.f32.mxu0 0.0
    %239 = vmatmul.mubr.f32.gmra.mrb[0].mxu0 %v102
    %v240 = vpop.f32.mrb[0].mxu0
    %v241 = vadd.f32 0.0, %v240
    %v242 = vpop.f32.mrb[0].mxu0
    %243 = vmatprep.mubr.f32.mxu0 0.0
    %244 = vmatmul.mubr.f32.gmra.mrb[0].mxu0 %v103
    %v245 = vpop.f32.mrb[0].mxu0
    %v246 = vadd.f32 0.0, %v245
    %v247 = vpop.f32.mrb[0].mxu0
    %248 = vmatprep.mubr.f32.mxu0 0.0
    %249 = vmatmul.mubr.f32.gmra.mrb[0].mxu0 %v104
    %v250 = vpop.f32.mrb[0].mxu0
    %v251 = vadd.f32 0.0, %v250
    %v252 = vpop.f32.mrb[0].mxu0
    %253 = vmatprep.mubr.f32.mxu0 0.0
    %254 = vmatmul.mubr.f32.gmra.mrb[0].mxu0 %v105
    %v255 = vpop.f32.mrb[0].mxu0
    %v256 = vadd.f32 0.0, %v255
    %v257 = vpop.f32.mrb[0].mxu0
    %258 = vmatprep.mubr.f32.mxu0 0.0
    %259 = vmatmul.mubr.f32.gmra.mrb[0].mxu0 %v106
    %v260 = vpop.f32.mrb[0].mxu0
    %v261 = vadd.f32 0.0, %v260
    %v262 = vpop.f32.mrb[0].mxu0
    %263 = vmatprep.mubr.f32.mxu0 0.0
    %264 = vmatmul.mubr.f32.gmra.mrb[0].mxu0 %v107
    %v265 = vpop.f32.mrb[0].mxu0
    %v266 = vadd.f32 0.0, %v265
    %v267 = vpop.f32.mrb[0].mxu0
    %268 = vdwg.mxu0
    %v269 = vadd.f32 %v76, %v191
    %v270 = vadd.f32 %v77, %v196
    %v271 = vadd.f32 %v78, %v201
    %v272 = vadd.f32 %v79, %v206
    %v273 = vadd.f32 %v80, %v211
    %v274 = vadd.f32 %v81, %v216
    %v275 = vadd.f32 %v82, %v221
    %v276 = vadd.f32 %v83, %v226
    %v277 = vadd.f32 %v84, %v231
    %v278 = vadd.f32 %v85, %v236
    %v279 = vadd.f32 %v86, %v241
    %v280 = vadd.f32 %v87, %v246
    %v281 = vadd.f32 %v88, %v251
    %v282 = vadd.f32 %v89, %v256
    %v283 = vadd.f32 %v90, %v261
    %v284 = vadd.f32 %v91, %v266
    %285 = vst [vmem:[#allocation2] sm:$0xff] %v269
    %286 = vst [vmem:[#allocation2 + $0x8] sm:$0xff] %v270
    %287 = vst [vmem:[#allocation2 + $0x10] sm:$0xff] %v271
    %288 = vst [vmem:[#allocation2 + $0x18] sm:$0xff] %v272
    %289 = vst [vmem:[#allocation2 + $0x20] sm:$0xff] %v273
    %290 = vst [vmem:[#allocation2 + $0x28] sm:$0xff] %v274
    %291 = vst [vmem:[#allocation2 + $0x30] sm:$0xff] %v275
    %292 = vst [vmem:[#allocation2 + $0x38] sm:$0xff] %v276
    %293 = vst [vmem:[#allocation2 + $0x40] sm:$0xff] %v277
    %294 = vst [vmem:[#allocation2 + $0x48] sm:$0xff] %v278
    %295 = vst [vmem:[#allocation2 + $0x50] sm:$0xff] %v279
    %296 = vst [vmem:[#allocation2 + $0x58] sm:$0xff] %v280
    %297 = vst [vmem:[#allocation2 + $0x60] sm:$0xff] %v281
    %298 = vst [vmem:[#allocation2 + $0x68] sm:$0xff] %v282
    %299 = vst [vmem:[#allocation2 + $0x70] sm:$0xff] %v283
    %300 = vst [vmem:[#allocation2 + $0x78] sm:$0xff] %v284
    // Predicated region
    $region30: #{tpu_custom_call.1} parent=1 // pred_check
      %p301 = pneg %p56
    $region31: #{tpu_custom_call.1} parent=1 // pred_check_branch
      %303 = sbr.rel (%p301) target = $region33
    $region32: #{tpu_custom_call.1} parent=1 // pred_region
      %v304 = vld [vmem:[#allocation2] sm:$0xff]
      %v305 = vld [vmem:[#allocation2 + $0x8] sm:$0xff]
      %v306 = vld [vmem:[#allocation2 + $0x10] sm:$0xff]
      %v307 = vld [vmem:[#allocation2 + $0x18] sm:$0xff]
      %v308 = vld [vmem:[#allocation2 + $0x20] sm:$0xff]
      %v309 = vld [vmem:[#allocation2 + $0x28] sm:$0xff]
      %v310 = vld [vmem:[#allocation2 + $0x30] sm:$0xff]
      %v311 = vld [vmem:[#allocation2 + $0x38] sm:$0xff]
      %v312 = vld [vmem:[#allocation2 + $0x40] sm:$0xff]
      %v313 = vld [vmem:[#allocation2 + $0x48] sm:$0xff]
      %v314 = vld [vmem:[#allocation2 + $0x50] sm:$0xff]
      %v315 = vld [vmem:[#allocation2 + $0x58] sm:$0xff]
      %v316 = vld [vmem:[#allocation2 + $0x60] sm:$0xff]
      %v317 = vld [vmem:[#allocation2 + $0x68] sm:$0xff]
      %v318 = vld [vmem:[#allocation2 + $0x70] sm:$0xff]
      %v319 = vld [vmem:[#allocation2 + $0x78] sm:$0xff]
      %v320 = vld [vmem:[#allocation8] sm:$0xff]
      %v321 = vld [vmem:[#allocation8 + $0x8] sm:$0xff]
      %v322 = vld [vmem:[#allocation8 + $0x10] sm:$0xff]
      %v323 = vld [vmem:[#allocation8 + $0x18] sm:$0xff]
      %v324 = vld [vmem:[#allocation8 + $0x20] sm:$0xff]
      %v325 = vld [vmem:[#allocation8 + $0x28] sm:$0xff]
      %v326 = vld [vmem:[#allocation8 + $0x30] sm:$0xff]
      %v327 = vld [vmem:[#allocation8 + $0x38] sm:$0xff]
      %v328 = vld [vmem:[#allocation8 + $0x40] sm:$0xff]
      %v329 = vld [vmem:[#allocation8 + $0x48] sm:$0xff]
      %v330 = vld [vmem:[#allocation8 + $0x50] sm:$0xff]
      %v331 = vld [vmem:[#allocation8 + $0x58] sm:$0xff]
      %v332 = vld [vmem:[#allocation8 + $0x60] sm:$0xff]
      %v333 = vld [vmem:[#allocation8 + $0x68] sm:$0xff]
      %v334 = vld [vmem:[#allocation8 + $0x70] sm:$0xff]
      %v335 = vld [vmem:[#allocation8 + $0x78] sm:$0xff]
      %336 = vmatprep.subr.mxu0 0.0
      %337 = vmatpush1.msra.mxu0 %v320
      %338 = vmatprep.subr.mxu0 0.0
      %339 = vmatpush1.msra.mxu0 %v321
      %340 = vmatprep.subr.mxu0 0.0
      %341 = vmatpush1.msra.mxu0 %v322
      %342 = vmatprep.subr.mxu0 0.0
      %343 = vmatpush1.msra.mxu0 %v323
      %344 = vmatprep.subr.mxu0 0.0
      %345 = vmatpush1.msra.mxu0 %v324
      %346 = vmatprep.subr.mxu0 0.0
      %347 = vmatpush1.msra.mxu0 %v325
      %348 = vmatprep.subr.mxu0 0.0
      %349 = vmatpush1.msra.mxu0 %v326
      %350 = vmatprep.subr.mxu0 0.0
      %351 = vmatpush1.msra.mxu0 %v327
      %352 = vmatprep.subr.mxu0 0.0
      %353 = vmatpush1.msra.mxu0 %v328
      %354 = vmatprep.subr.mxu0 0.0
      %355 = vmatpush1.msra.mxu0 %v329
      %356 = vmatprep.subr.mxu0 0.0
      %357 = vmatpush1.msra.mxu0 %v330
      %358 = vmatprep.subr.mxu0 0.0
      %359 = vmatpush1.msra.mxu0 %v331
      %360 = vmatprep.subr.mxu0 0.0
      %361 = vmatpush1.msra.mxu0 %v332
      %362 = vmatprep.subr.mxu0 0.0
      %363 = vmatpush1.msra.mxu0 %v333
      %364 = vmatprep.subr.mxu0 0.0
      %365 = vmatpush1.msra.mxu0 %v334
      %366 = vmatprep.subr.mxu0 0.0
      %367 = vmatpush1.msra.mxu0 %v335
      %368 = vmatprep.subr.mxu0 0.0
      %369 = vmatpush1.msra.mxu0 0.0
      %370 = vmatprep.subr.mxu0 0.0
      %371 = vmatpush1.msra.mxu0 0.0
      %372 = vmatprep.subr.mxu0 0.0
      %373 = vmatpush1.msra.mxu0 0.0
      %374 = vmatprep.subr.mxu0 0.0
      %375 = vmatpush1.msra.mxu0 0.0
      %376 = vmatprep.subr.mxu0 0.0
      %377 = vmatpush1.msra.mxu0 0.0
      %378 = vmatprep.subr.mxu0 0.0
      %379 = vmatpush1.msra.mxu0 0.0
      %380 = vmatprep.subr.mxu0 0.0
      %381 = vmatpush1.msra.mxu0 0.0
      %382 = vmatprep.subr.mxu0 0.0
      %383 = vmatpush1.msra.mxu0 0.0
      %384 = vmatprep.subr.mxu0 0.0
      %385 = vmatpush1.msra.mxu0 0.0
      %386 = vmatprep.subr.mxu0 0.0
      %387 = vmatpush1.msra.mxu0 0.0
      %388 = vmatprep.subr.mxu0 0.0
      %389 = vmatpush1.msra.mxu0 0.0
      %390 = vmatprep.subr.mxu0 0.0
      %391 = vmatpush1.msra.mxu0 0.0
      %392 = vmatprep.subr.mxu0 0.0
      %393 = vmatpush1.msra.mxu0 0.0
      %394 = vmatprep.subr.mxu0 0.0
      %395 = vmatpush1.msra.mxu0 0.0
      %396 = vmatprep.subr.mxu0 0.0
      %397 = vmatpush1.msra.mxu0 0.0
      %398 = vmatprep.subr.mxu0 0.0
      %399 = vmatpush1.msra.mxu0 0.0
      %400 = vmatprep.mubr.f32.mxu0 0.0
      %401 = vmatmul.mubr.f32.gmra.mrb[0].mxu0 %v304
      %v402 = vpop.f32.mrb[0].mxu0
      %v403 = vadd.f32 0.0, %v402
      %v404 = vpop.f32.mrb[0].mxu0
      %405 = vmatprep.mubr.f32.mxu0 0.0
      %406 = vmatmul.mubr.f32.gmra.mrb[0].mxu0 %v305
      %v407 = vpop.f32.mrb[0].mxu0
      %v408 = vadd.f32 0.0, %v407
      %v409 = vpop.f32.mrb[0].mxu0
      %410 = vmatprep.mubr.f32.mxu0 0.0
      %411 = vmatmul.mubr.f32.gmra.mrb[0].mxu0 %v306
      %v412 = vpop.f32.mrb[0].mxu0
      %v413 = vadd.f32 0.0, %v412
      %v414 = vpop.f32.mrb[0].mxu0
      %415 = vmatprep.mubr.f32.mxu0 0.0
      %416 = vmatmul.mubr.f32.gmra.mrb[0].mxu0 %v307
      %v417 = vpop.f32.mrb[0].mxu0
      %v418 = vadd.f32 0.0, %v417
      %v419 = vpop.f32.mrb[0].mxu0
      %420 = vmatprep.mubr.f32.mxu0 0.0
      %421 = vmatmul.mubr.f32.gmra.mrb[0].mxu0 %v308
      %v422 = vpop.f32.mrb[0].mxu0
      %v423 = vadd.f32 0.0, %v422
      %v424 = vpop.f32.mrb[0].mxu0
      %425 = vmatprep.mubr.f32.mxu0 0.0
      %426 = vmatmul.mubr.f32.gmra.mrb[0].mxu0 %v309
      %v427 = vpop.f32.mrb[0].mxu0
      %v428 = vadd.f32 0.0, %v427
      %v429 = vpop.f32.mrb[0].mxu0
      %430 = vmatprep.mubr.f32.mxu0 0.0
      %431 = vmatmul.mubr.f32.gmra.mrb[0].mxu0 %v310
      %v432 = vpop.f32.mrb[0].mxu0
      %v433 = vadd.f32 0.0, %v432
      %v434 = vpop.f32.mrb[0].mxu0
      %435 = vmatprep.mubr.f32.mxu0 0.0
      %436 = vmatmul.mubr.f32.gmra.mrb[0].mxu0 %v311
      %v437 = vpop.f32.mrb[0].mxu0
      %v438 = vadd.f32 0.0, %v437
      %v439 = vpop.f32.mrb[0].mxu0
      %440 = vmatprep.mubr.f32.mxu0 0.0
      %441 = vmatmul.mubr.f32.gmra.mrb[0].mxu0 %v312
      %v442 = vpop.f32.mrb[0].mxu0
      %v443 = vadd.f32 0.0, %v442
      %v444 = vpop.f32.mrb[0].mxu0
      %445 = vmatprep.mubr.f32.mxu0 0.0
      %446 = vmatmul.mubr.f32.gmra.mrb[0].mxu0 %v313
      %v447 = vpop.f32.mrb[0].mxu0
      %v448 = vadd.f32 0.0, %v447
      %v449 = vpop.f32.mrb[0].mxu0
      %450 = vmatprep.mubr.f32.mxu0 0.0
      %451 = vmatmul.mubr.f32.gmra.mrb[0].mxu0 %v314
      %v452 = vpop.f32.mrb[0].mxu0
      %v453 = vadd.f32 0.0, %v452
      %v454 = vpop.f32.mrb[0].mxu0
      %455 = vmatprep.mubr.f32.mxu0 0.0
      %456 = vmatmul.mubr.f32.gmra.mrb[0].mxu0 %v315
      %v457 = vpop.f32.mrb[0].mxu0
      %v458 = vadd.f32 0.0, %v457
      %v459 = vpop.f32.mrb[0].mxu0
      %460 = vmatprep.mubr.f32.mxu0 0.0
      %461 = vmatmul.mubr.f32.gmra.mrb[0].mxu0 %v316
      %v462 = vpop.f32.mrb[0].mxu0
      %v463 = vadd.f32 0.0, %v462
      %v464 = vpop.f32.mrb[0].mxu0
      %465 = vmatprep.mubr.f32.mxu0 0.0
      %466 = vmatmul.mubr.f32.gmra.mrb[0].mxu0 %v317
      %v467 = vpop.f32.mrb[0].mxu0
      %v468 = vadd.f32 0.0, %v467
      %v469 = vpop.f32.mrb[0].mxu0
      %470 = vmatprep.mubr.f32.mxu0 0.0
      %471 = vmatmul.mubr.f32.gmra.mrb[0].mxu0 %v318
      %v472 = vpop.f32.mrb[0].mxu0
      %v473 = vadd.f32 0.0, %v472
      %v474 = vpop.f32.mrb[0].mxu0
      %475 = vmatprep.mubr.f32.mxu0 0.0
      %476 = vmatmul.mubr.f32.gmra.mrb[0].mxu0 %v319
      %v477 = vpop.f32.mrb[0].mxu0
      %v478 = vadd.f32 0.0, %v477
      %v479 = vpop.f32.mrb[0].mxu0
      %480 = vdwg.mxu0
      %481 = vst [vmem:[#allocation9] sm:$0xff] %v403
      %482 = vst [vmem:[#allocation9 + $0x8] sm:$0xff] %v408
      %483 = vst [vmem:[#allocation9 + $0x10] sm:$0xff] %v413
      %484 = vst [vmem:[#allocation9 + $0x18] sm:$0xff] %v418
      %485 = vst [vmem:[#allocation9 + $0x20] sm:$0xff] %v423
      %486 = vst [vmem:[#allocation9 + $0x28] sm:$0xff] %v428
      %487 = vst [vmem:[#allocation9 + $0x30] sm:$0xff] %v433
      %488 = vst [vmem:[#allocation9 + $0x38] sm:$0xff] %v438
      %489 = vst [vmem:[#allocation9 + $0x40] sm:$0xff] %v443
      %490 = vst [vmem:[#allocation9 + $0x48] sm:$0xff] %v448
      %491 = vst [vmem:[#allocation9 + $0x50] sm:$0xff] %v453
      %492 = vst [vmem:[#allocation9 + $0x58] sm:$0xff] %v458
      %493 = vst [vmem:[#allocation9 + $0x60] sm:$0xff] %v463
      %494 = vst [vmem:[#allocation9 + $0x68] sm:$0xff] %v468
      %495 = vst [vmem:[#allocation9 + $0x70] sm:$0xff] %v473
      %496 = vst [vmem:[#allocation9 + $0x78] sm:$0xff] %v478
    $region33: #{tpu_custom_call.1} parent=1 // pred_fallthru
      _
    // Predicated region
    $region34: #{tpu_custom_call.1} parent=1 // pred_check
      _
    $region35: #{tpu_custom_call.1} parent=1 // pred_check_branch
      %498 = sbr.rel (0) target = $region37
    $region36: #{tpu_custom_call.1} parent=1 // pred_region
      %s500 = ssub.s32 2048, 2048
      %501 = vsyncadd [#allocation5], %s500
      %s502 = sshll.u32 [#allocation9], 4
      %s503 = int_to_ptr.vmem [resolvable:$true] %s502
      %508 = dma.vmem_to_hbm [thread:$0]  %s503, 2048, %s3, [#allocation5], 128, 128, 8
    $region37: #{tpu_custom_call.1} parent=1 // pred_fallthru
      _
    // Predicated region
    $region38: #{tpu_custom_call.1} parent=1 // pred_check
      _
    $region39: #{tpu_custom_call.1} parent=1 // pred_check_branch
      %510 = sbr.rel (0) target = $region41
    $region40: #{tpu_custom_call.1} parent=1 // pred_region
      %511 = dma.done [#allocation5], 2048
    $region41: #{tpu_custom_call.1} parent=1 // pred_fallthru
      _
    %512 = vsyncpa [#allocation4], 1
    %513 = vsyncpa [#allocation7], 1
    %514 = vsyncpa [#allocation5], 1

</llo_original>
